<compile_context>
chip_gen: v5e
topology: v5e:2x2
jax: 0.10.0
libtpu: 0.0.40
codegen_flags: <defaults>
</compile_context>

<pallas_src>
import math

import jax
import jax.numpy as jnp
from jax import lax
from jax.experimental import pallas as pl
from jax.experimental.pallas import tpu as pltpu

INPUT = 4      # model input features
DIM = 100      # logical hidden width (as in the PyTorch module)
HID_PAD = 128  # lane-padded hidden width used inside the kernel


def _round_up(x, m):
    return (x + m - 1) // m * m


def _gelu_exact(x):
    # PyTorch nn.GELU() default: exact erf formulation.
    return 0.5 * x * (1.0 + lax.erf(x * (1.0 / math.sqrt(2.0))))


def mlp_kernel(x_ref, w1_ref, b1_ref, w2_ref, b2_ref, w3_ref, b3_ref, o_ref):
    x = x_ref[...]                                   # (TM, 4)

    # Layer 1: Linear(4 -> 128pad) + GELU   (dropout = identity in eval mode)
    h = jnp.dot(x, w1_ref[...], preferred_element_type=jnp.float32) + b1_ref[...]
    h = _gelu_exact(h)                               # (TM, 128), cols >= 100 are 0

    # Layer 2: Linear(128pad -> 128pad) + GELU (dropout = identity in eval mode)
    h = jnp.dot(h, w2_ref[...], preferred_element_type=jnp.float32) + b2_ref[...]
    h = _gelu_exact(h)                               # (TM, 128), cols >= 100 are 0

    # Layer 3: Linear(128pad -> 1) as VPU mul + lane reduction (avoids N=1 MXU pass)
    y = jnp.sum(h * w3_ref[...], axis=-1, keepdims=True) + b3_ref[...]

    o_ref[...] = jax.nn.sigmoid(y)                   # (TM, 1)


def _pad_params(params):
    """Zero-pad hidden width 100 -> 128; exactness preserved (GELU(0)=0)."""
    w1, b1, w2, b2, w3, b3 = params
    w1p = jnp.zeros((INPUT, HID_PAD), jnp.float32).at[:, :DIM].set(w1)
    b1p = jnp.zeros((1, HID_PAD), jnp.float32).at[:, :DIM].set(b1)
    w2p = jnp.zeros((HID_PAD, HID_PAD), jnp.float32).at[:DIM, :DIM].set(w2)
    b2p = jnp.zeros((1, HID_PAD), jnp.float32).at[:, :DIM].set(b2)
    w3p = jnp.zeros((1, HID_PAD), jnp.float32).at[:, :DIM].set(w3.reshape(1, DIM))
    b3p = b3.reshape(1, 1)
    return w1p, b1p, w2p, b2p, w3p, b3p


def neural_model_forward(x, params, *, tile_m=1024):
    """x: (B, INPUT) float32 -> (B, 1) float32."""
    w1p, b1p, w2p, b2p, w3p, b3p = _pad_params(params)

    B = x.shape[0]
    TM = min(tile_m, _round_up(B, 8))      # batch tile, multiple of 8 sublanes
    pad_B = _round_up(B, TM)
    if pad_B != B:
        x = jnp.pad(x, ((0, pad_B - B), (0, 0)))

    const = lambda i: (0, 0)               # weights/biases stay VMEM-resident

    out = pl.pallas_call(
        mlp_kernel,
        out_shape=jax.ShapeDtypeStruct((pad_B, 1), jnp.float32),
        grid=(pad_B // TM,),
        in_specs=[
            pl.BlockSpec((TM, INPUT), lambda i: (i, 0)),      # x tile streams
            pl.BlockSpec((INPUT, HID_PAD), const),            # w1
            pl.BlockSpec((1, HID_PAD), const),                # b1
            pl.BlockSpec((HID_PAD, HID_PAD), const),          # w2
            pl.BlockSpec((1, HID_PAD), const),                # b2
            pl.BlockSpec((1, HID_PAD), const),                # w3 (row)
            pl.BlockSpec((1, 1), const),                      # b3
        ],
        out_specs=pl.BlockSpec((TM, 1), lambda i: (i, 0)),
        compiler_params=pltpu.CompilerParams(
            dimension_semantics=("parallel",),     # megacore sharding on v7x
            vmem_limit_bytes=32 * 1024 * 1024,     # fits v5e/v6e/v7x comfortably
        ),
    )(x, w1p, b1p, w2p, b2p, w3p, b3p)

    return out[:B]


def init_params(key):
    """Deterministic init matching torch.nn.Linear default:
    U(-1/sqrt(fan_in), 1/sqrt(fan_in)) for weights and biases."""
    def linear_init(k, fan_in, fan_out):
        kw, kb = jax.random.split(k)
        bound = 1.0 / math.sqrt(fan_in)
        # store weight as (fan_in, fan_out) so math is x @ W
        w = jax.random.uniform(kw, (fan_in, fan_out), jnp.float32, -bound, bound)
        b = jax.random.uniform(kb, (1, fan_out), jnp.float32, -bound, bound)
        return w, b

    k1, k2, k3 = jax.random.split(key, 3)
    w1, b1 = linear_init(k1, INPUT, DIM)
    w2, b2 = linear_init(k2, DIM, DIM)
    w3, b3 = linear_init(k3, DIM, 1)
    return (w1, b1, w2, b2, w3, b3)


def reference_forward(x, params):
    w1, b1, w2, b2, w3, b3 = params
    h = _gelu_exact(x @ w1 + b1)
    h = _gelu_exact(h @ w2 + b2)
    return jax.nn.sigmoid(h @ w3 + b3)


if __name__ == "__main__":
    key = jax.random.PRNGKey(0)
    k_params, k_x = jax.random.split(key)

    params = init_params(k_params)
    B = 8
    x = jax.random.normal(k_x, (B, INPUT), jnp.float32)

    out = neural_model_forward(x, params)
    out = jax.block_until_ready(out)

    ref = reference_forward(x, params)
    assert out.shape == (B, 1), out.shape
    assert jnp.allclose(out, ref, atol=1e-5, rtol=1e-5), (out, ref)

    print("KERNEL_OK")
</pallas_src>

<mosaic_0001>
module attributes {stable_mosaic.version = 11 : i64} {
  func.func @mlp_kernel(%arg0: i32, %arg1: memref<8x4xf32, #tpu.memory_space<vmem>>, %arg2: memref<4x128xf32, #tpu.memory_space<vmem>>, %arg3: memref<1x128xf32, #tpu.memory_space<vmem>>, %arg4: memref<128x128xf32, #tpu.memory_space<vmem>>, %arg5: memref<1x128xf32, #tpu.memory_space<vmem>>, %arg6: memref<1x128xf32, #tpu.memory_space<vmem>>, %arg7: memref<1x1xf32, #tpu.memory_space<vmem>>, %arg8: memref<8x1xf32, #tpu.memory_space<vmem>>) attributes {dimension_semantics = [#tpu.dimension_semantics<parallel>], iteration_bounds = array<i64: 1>, scalar_prefetch = 0 : i64, scratch_operands = 0 : i64, tpu.core_type = #tpu.core_type<tc>, window_params = [{transform_indices = @transform_0, window_bounds = array<i64: 8, 4>}, {pipeline_mode = #tpu.pipeline_mode<synchronous>, transform_indices = @transform_1, window_bounds = array<i64: 4, 128>}, {pipeline_mode = #tpu.pipeline_mode<synchronous>, transform_indices = @transform_2, window_bounds = array<i64: 1, 128>}, {pipeline_mode = #tpu.pipeline_mode<synchronous>, transform_indices = @transform_3, window_bounds = array<i64: 128, 128>}, {pipeline_mode = #tpu.pipeline_mode<synchronous>, transform_indices = @transform_4, window_bounds = array<i64: 1, 128>}, {pipeline_mode = #tpu.pipeline_mode<synchronous>, transform_indices = @transform_5, window_bounds = array<i64: 1, 128>}, {pipeline_mode = #tpu.pipeline_mode<synchronous>, transform_indices = @transform_6, window_bounds = array<i64: 1, 1>}, {transform_indices = @transform_7, window_bounds = array<i64: 8, 1>}]} {
    %c0 = arith.constant 0 : index
    %c0_0 = arith.constant 0 : index
    %0 = vector.load %arg1[%c0, %c0_0] : memref<8x4xf32, #tpu.memory_space<vmem>>, vector<8x4xf32>
    %c0_1 = arith.constant 0 : index
    %c0_2 = arith.constant 0 : index
    %1 = vector.load %arg2[%c0_1, %c0_2] : memref<4x128xf32, #tpu.memory_space<vmem>>, vector<4x128xf32>
    %cst = arith.constant dense<0.000000e+00> : vector<8x128xf32>
    %2 = tpu.matmul %0, %1, %cst {dimension_numbers = #tpu.dot_dimension_numbers<[1], [0], [0], [1], [0, 0, 1, 1], [], []>} : vector<8x4xf32>, vector<4x128xf32>, vector<8x128xf32> -> vector<8x128xf32>
    %c0_3 = arith.constant 0 : index
    %c0_4 = arith.constant 0 : index
    %3 = vector.load %arg3[%c0_3, %c0_4] : memref<1x128xf32, #tpu.memory_space<vmem>>, vector<1x128xf32>
    %4 = vector.broadcast %3 : vector<1x128xf32> to vector<8x128xf32>
    %5 = arith.addf %2, %4 : vector<8x128xf32>
    %cst_5 = arith.constant 5.000000e-01 : f32
    %6 = vector.broadcast %cst_5 : f32 to vector<8x128xf32>
    %7 = arith.mulf %6, %5 : vector<8x128xf32>
    %cst_6 = arith.constant 0.707106769 : f32
    %8 = vector.broadcast %cst_6 : f32 to vector<8x128xf32>
    %9 = arith.mulf %5, %8 : vector<8x128xf32>
    %10 = math.erf %9 : vector<8x128xf32>
    %cst_7 = arith.constant 1.000000e+00 : f32
    %11 = vector.broadcast %cst_7 : f32 to vector<8x128xf32>
    %12 = arith.addf %11, %10 : vector<8x128xf32>
    %13 = arith.mulf %7, %12 : vector<8x128xf32>
    %c0_8 = arith.constant 0 : index
    %c0_9 = arith.constant 0 : index
    %14 = vector.load %arg4[%c0_8, %c0_9] : memref<128x128xf32, #tpu.memory_space<vmem>>, vector<128x128xf32>
    %cst_10 = arith.constant dense<0.000000e+00> : vector<8x128xf32>
    %15 = tpu.matmul %13, %14, %cst_10 {dimension_numbers = #tpu.dot_dimension_numbers<[1], [0], [0], [1], [0, 0, 1, 1], [], []>} : vector<8x128xf32>, vector<128x128xf32>, vector<8x128xf32> -> vector<8x128xf32>
    %c0_11 = arith.constant 0 : index
    %c0_12 = arith.constant 0 : index
    %16 = vector.load %arg5[%c0_11, %c0_12] : memref<1x128xf32, #tpu.memory_space<vmem>>, vector<1x128xf32>
    %17 = vector.broadcast %16 : vector<1x128xf32> to vector<8x128xf32>
    %18 = arith.addf %15, %17 : vector<8x128xf32>
    %cst_13 = arith.constant 5.000000e-01 : f32
    %19 = vector.broadcast %cst_13 : f32 to vector<8x128xf32>
    %20 = arith.mulf %19, %18 : vector<8x128xf32>
    %cst_14 = arith.constant 0.707106769 : f32
    %21 = vector.broadcast %cst_14 : f32 to vector<8x128xf32>
    %22 = arith.mulf %18, %21 : vector<8x128xf32>
    %23 = math.erf %22 : vector<8x128xf32>
    %cst_15 = arith.constant 1.000000e+00 : f32
    %24 = vector.broadcast %cst_15 : f32 to vector<8x128xf32>
    %25 = arith.addf %24, %23 : vector<8x128xf32>
    %26 = arith.mulf %20, %25 : vector<8x128xf32>
    %c0_16 = arith.constant 0 : index
    %c0_17 = arith.constant 0 : index
    %27 = vector.load %arg6[%c0_16, %c0_17] : memref<1x128xf32, #tpu.memory_space<vmem>>, vector<1x128xf32>
    %28 = vector.broadcast %27 : vector<1x128xf32> to vector<8x128xf32>
    %29 = arith.mulf %26, %28 : vector<8x128xf32>
    %cst_18 = arith.constant dense<0.000000e+00> : vector<8xf32>
    %30 = vector.multi_reduction <add>, %29, %cst_18 [1] : vector<8x128xf32> to vector<8xf32>
    %31 = vector.shape_cast %30 : vector<8xf32> to vector<8x1xf32>
    %c0_19 = arith.constant 0 : index
    %c0_20 = arith.constant 0 : index
    %32 = vector.load %arg7[%c0_19, %c0_20] : memref<1x1xf32, #tpu.memory_space<vmem>>, vector<1x1xf32>
    %33 = vector.broadcast %32 : vector<1x1xf32> to vector<8x1xf32>
    %34 = arith.addf %31, %33 : vector<8x1xf32>
    %35 = arith.negf %34 : vector<8x1xf32>
    %36 = math.exp %35 : vector<8x1xf32>
    %cst_21 = arith.constant 1.000000e+00 : f32
    %37 = vector.broadcast %cst_21 : f32 to vector<8x1xf32>
    %38 = arith.addf %37, %36 : vector<8x1xf32>
    %39 = arith.divf %37, %38 : vector<8x1xf32>
    %c0_22 = arith.constant 0 : index
    %c0_23 = arith.constant 0 : index
    %40 = vector.load %arg8[%c0_22, %c0_23] : memref<8x1xf32, #tpu.memory_space<vmem>>, vector<8x1xf32>
    tpu.vector_store %arg8[%c0_22, %c0_23], %39 {strides = array<i32>} : memref<8x1xf32, #tpu.memory_space<vmem>>, vector<8x1xf32>,
    return
  }
  func.func @transform_0(%arg0: i32) -> (i32, i32) {
    %c0_i32 = arith.constant 0 : i32
    %c0_i32_0 = arith.constant 0 : i32
    return %arg0, %c0_i32 : i32, i32
  }
  func.func @transform_1(%arg0: i32) -> (i32, i32) {
    %c0_i32 = arith.constant 0 : i32
    %c0_i32_0 = arith.constant 0 : i32
    %c0_i32_1 = arith.constant 0 : i32
    return %c0_i32, %c0_i32_0 : i32, i32
  }
  func.func @transform_2(%arg0: i32) -> (i32, i32) {
    %c0_i32 = arith.constant 0 : i32
    %c0_i32_0 = arith.constant 0 : i32
    %c0_i32_1 = arith.constant 0 : i32
    return %c0_i32, %c0_i32_0 : i32, i32
  }
  func.func @transform_3(%arg0: i32) -> (i32, i32) {
    %c0_i32 = arith.constant 0 : i32
    %c0_i32_0 = arith.constant 0 : i32
    %c0_i32_1 = arith.constant 0 : i32
    return %c0_i32, %c0_i32_0 : i32, i32
  }
  func.func @transform_4(%arg0: i32) -> (i32, i32) {
    %c0_i32 = arith.constant 0 : i32
    %c0_i32_0 = arith.constant 0 : i32
    %c0_i32_1 = arith.constant 0 : i32
    return %c0_i32, %c0_i32_0 : i32, i32
  }
  func.func @transform_5(%arg0: i32) -> (i32, i32) {
    %c0_i32 = arith.constant 0 : i32
    %c0_i32_0 = arith.constant 0 : i32
    %c0_i32_1 = arith.constant 0 : i32
    return %c0_i32, %c0_i32_0 : i32, i32
  }
  func.func @transform_6(%arg0: i32) -> (i32, i32) {
    %c0_i32 = arith.constant 0 : i32
    %c0_i32_0 = arith.constant 0 : i32
    %c0_i32_1 = arith.constant 0 : i32
    return %c0_i32, %c0_i32_0 : i32, i32
  }
  func.func @transform_7(%arg0: i32) -> (i32, i32) {
    %c0_i32 = arith.constant 0 : i32
    %c0_i32_0 = arith.constant 0 : i32
    return %arg0, %c0_i32 : i32, i32
  }
}

</mosaic_0001>

<llo_original>
// kernel: tpu_custom_call.1
$region0: #{tpu_custom_call.1}
  #allocation0 [shape = 'u32[]', space=smem, size = 0x4, offset = 0x4, fixed_abs, tag = 'smem constant byte address 0x4 - core index']
  #allocation1 [shape = 'u32[72,128]{1,0:T(1,128)}', space=vmem, size = 0x9000, scoped, tag = 'internal scratch']
  #allocation2 [shape = 'f32[1,1]{1,0:T(1,128)S(1)}', space=vmem, size = 0x200, scoped, tag = 'scoped memory for tpu_custom_call.1']
  %s0 = inlined_call_operand.vmem [shape: f32[8,4], index: 0, kind: input, shape index: {}]
  %s1 = inlined_call_operand.vmem [shape: f32[4,128], index: 1, kind: input, shape index: {}]
  %s2 = inlined_call_operand.vmem [shape: f32[1,128], index: 2, kind: input, shape index: {}]
  %s3 = inlined_call_operand.hbm [shape: f32[128,128], index: 3, kind: input, shape index: {}]
  %s4 = inlined_call_operand.vmem [shape: f32[1,128], index: 4, kind: input, shape index: {}]
  %s5 = inlined_call_operand.vmem [shape: f32[1,128], index: 5, kind: input, shape index: {}]
  %s6 = inlined_call_operand.<no memory space> [shape: f32[1,1], index: 6, kind: input, shape index: {}]
  %s7 = inlined_call_operand.vmem [shape: f32[8,1], index: 7, kind: output, shape index: {}]
  %s8 = sld [smem:[#allocation0]]
  $region42: #{tpu_custom_call.1} parent=0
    _
  %s10 = ssub.s32 1, %s8
  %s11 = scalar_select 0, %s10, %s8
  %v12 = vstv %s6
  %13 = vst [vmem:[#allocation2] sm:$0x1] %v12
  $region1: #{tpu_custom_call.1} parent=0
    #allocation3 [shape = 'u8[65536]{0}', space=vmem, size = 0x10000, scoped, tag = 'input window, operand 3, single buffered']
    #allocation4 [shape = 's32[1]{0}', space=sflag, size = 0x4, scoped, tag = 'scoped memory for tpu_custom_call.1']
    %14 = vsyncpa [#allocation4], 0
    // Predicated region
    $region2: #{tpu_custom_call.1} parent=1 // pred_check
      _
    $region3: #{tpu_custom_call.1} parent=1 // pred_check_branch
      %16 = sbr.rel (0) target = $region5
    $region4: #{tpu_custom_call.1} parent=1 // pred_region
      _
    $region5: #{tpu_custom_call.1} parent=1 // pred_fallthru
      _
    // Predicated region
    $region6: #{tpu_custom_call.1} parent=1 // pred_check
      _
    $region7: #{tpu_custom_call.1} parent=1 // pred_check_branch
      %18 = sbr.rel (0) target = $region9
    $region8: #{tpu_custom_call.1} parent=1 // pred_region
      _
    $region9: #{tpu_custom_call.1} parent=1 // pred_fallthru
      _
    // Predicated region
    $region10: #{tpu_custom_call.1} parent=1 // pred_check
      _
    $region11: #{tpu_custom_call.1} parent=1 // pred_check_branch
      %20 = sbr.rel (0) target = $region13
    $region12: #{tpu_custom_call.1} parent=1 // pred_region
      _
    $region13: #{tpu_custom_call.1} parent=1 // pred_fallthru
      _
    // Predicated region
    $region14: #{tpu_custom_call.1} parent=1 // pred_check
      _
    $region15: #{tpu_custom_call.1} parent=1 // pred_check_branch
      %22 = sbr.rel (0) target = $region17
    $region16: #{tpu_custom_call.1} parent=1 // pred_region
      %24 = vsyncadd [#allocation4], 0
      %s25 = sshll.u32 %s3, 4
      %s26 = int_to_ptr.hbm [resolvable:$true] %s25
      %s27 = sshll.u32 [#allocation3], 4
      %s28 = int_to_ptr.vmem [resolvable:$true] %s27
      %33 = dma.hbm_to_vmem [thread:$0]  %s26, 2048, %s28, [#allocation4], 128, 128, 8
    $region17: #{tpu_custom_call.1} parent=1 // pred_fallthru
      _
    // Predicated region
    $region18: #{tpu_custom_call.1} parent=1 // pred_check
      _
    $region19: #{tpu_custom_call.1} parent=1 // pred_check_branch
      %35 = sbr.rel (0) target = $region21
    $region20: #{tpu_custom_call.1} parent=1 // pred_region
      _
    $region21: #{tpu_custom_call.1} parent=1 // pred_fallthru
      _
    // Predicated region
    $region22: #{tpu_custom_call.1} parent=1 // pred_check
      _
    $region23: #{tpu_custom_call.1} parent=1 // pred_check_branch
      %37 = sbr.rel (0) target = $region25
    $region24: #{tpu_custom_call.1} parent=1 // pred_region
      _
    $region25: #{tpu_custom_call.1} parent=1 // pred_fallthru
      _
    // Predicated region
    $region26: #{tpu_custom_call.1} parent=1 // pred_check
      _
    $region27: #{tpu_custom_call.1} parent=1 // pred_check_branch
      %39 = sbr.rel (0) target = $region29
    $region28: #{tpu_custom_call.1} parent=1 // pred_region
      _
    $region29: #{tpu_custom_call.1} parent=1 // pred_fallthru
      _
    // Predicated region
    $region30: #{tpu_custom_call.1} parent=1 // pred_check
      _
    $region31: #{tpu_custom_call.1} parent=1 // pred_check_branch
      %41 = sbr.rel (0) target = $region33
    $region32: #{tpu_custom_call.1} parent=1 // pred_region
      %43 = dma.done [#allocation4], 2048
    $region33: #{tpu_custom_call.1} parent=1 // pred_fallthru
      _
    %v44 = vld [vmem:[%s0] sm:$0xff]
    %v45 = vld [vmem:[%s1] sm:$0xf]
    %v46 = vld [vmem:[%s2] sm:$0x1]
    %v48 = vperm.slane %v46, 0
    %vm50 = vcmask 31744
    %v52 = vsel %vm50, %v44, 0
    %vm54 = vcmask 1043456
    %v56 = vsel %vm54, %v45, 0
    %58 = vmatpush.msra.mxu0 0.0
    %59 = vmatpush.msra.mxu0 0.0
    %60 = vmatpush.msra.mxu0 0.0
    %61 = vmatpush.msra.mxu0 0.0
    %62 = vmatpush.msra.mxu0 0.0
    %63 = vmatpush.msra.mxu0 0.0
    %64 = vmatpush.msra.mxu0 0.0
    %65 = vmatpush.msra.mxu0 0.0
    %66 = vmatpush.msra.mxu0 0.0
    %67 = vmatpush.msra.mxu0 0.0
    %68 = vmatpush.msra.mxu0 0.0
    %69 = vmatpush.msra.mxu0 0.0
    %70 = vmatpush.msra.mxu0 0.0
    %71 = vmatpush.msra.mxu0 0.0
    %72 = vmatpush.msra.mxu0 0.0
    %73 = vmatpush.msra.mxu0 %v56
    %74 = vmatmul.f32.gmra.mxu0 %v52
    %v75 = vpop.f32.mrf.mxu0
    %v76 = vadd.f32 %v48, %v75
    %77 = vdwg.mxu0
    %v78 = vmul.f32 %v76, 0.5
    %v79 = vmul.f32 %v76, 0.70710677
    %v80 = vmul.f32 %v79, %v79
    %v81 = vmin.f32 16.0, %v80
    %v82 = vmul.f32 %v81, 2.1237322e-06
    %v83 = vadd.f32 %v82, 0.00028619796
    %v84 = vmul.f32 %v81, %v83
    %v85 = vadd.f32 %v84, 0.0036580483
    %v86 = vmul.f32 %v81, %v85
    %v87 = vadd.f32 %v86, 0.05243302
    %v88 = vmul.f32 %v81, %v87
    %v89 = vadd.f32 %v88, 0.18741608
    %v90 = vmul.f32 %v81, %v89
    %v91 = vadd.f32 %v90, 1.1283791
    %v92 = vmul.f32 %v79, %v91
    %v93 = vmul.f32 %v81, 3.8918573e-05
    %v94 = vadd.f32 %v93, 0.001143296
    %v95 = vmul.f32 %v81, %v94
    %v96 = vadd.f32 %v95, 0.014752088
    %v97 = vmul.f32 %v81, %v96
    %v98 = vadd.f32 %v97, 0.112945676
    %v99 = vmul.f32 %v81, %v98
    %v100 = vadd.f32 %v99, 0.4994258
    %v101 = vmul.f32 %v81, %v100
    %v102 = vadd.f32 %v101, 1.0
    %v103 = vrcp.pop %v102
    %v104 = vmul.f32 %v102, %v103
    %v105 = vsub.f32 1.0, %v104
    %v106 = vmul.f32 %v103, %v105
    %v107 = vadd.f32 %v103, %v106
    %vm108 = vweird.f32 %v102
    %vm109 = vweird.f32 %v103
    %vm110 = vmor %vm108, %vm109
    %v111 = vsel %vm110, %v103, %v107
    %v112 = vand.u32 2147483647, %v102
    %vm113 = vcmp.eq.f32.partialorder %v112, 8.507059e+37
    %v114 = vand.u32 %v102, 2147483648
    %v115 = vor.u32 1.1754944e-38, %v114
    %v116 = vsel %vm113, %v115, %v111
    %v117 = vmul.f32 %v92, %v116
    %v118 = vmin.f32 %v117, 1.0
    %v119 = vmax.f32 %v118, -1.0
    %v120 = vadd.f32 %v119, 1.0
    %v121 = vmul.f32 %v78, %v120
    %v122 = vld [vmem:[#allocation3] sm:$0xff]
    %v123 = vld [vmem:[#allocation3 + $0x8] sm:$0xff]
    %v124 = vld [vmem:[#allocation3 + $0x10] sm:$0xff]
    %v125 = vld [vmem:[#allocation3 + $0x18] sm:$0xff]
    %v126 = vld [vmem:[#allocation3 + $0x20] sm:$0xff]
    %v127 = vld [vmem:[#allocation3 + $0x28] sm:$0xff]
    %v128 = vld [vmem:[#allocation3 + $0x30] sm:$0xff]
    %v129 = vld [vmem:[#allocation3 + $0x38] sm:$0xff]
    %v130 = vld [vmem:[#allocation3 + $0x40] sm:$0xff]
    %v131 = vld [vmem:[#allocation3 + $0x48] sm:$0xff]
    %v132 = vld [vmem:[#allocation3 + $0x50] sm:$0xff]
    %v133 = vld [vmem:[#allocation3 + $0x58] sm:$0xff]
    %v134 = vld [vmem:[#allocation3 + $0x60] sm:$0xff]
    %v135 = vld [vmem:[#allocation3 + $0x68] sm:$0xff]
    %v136 = vld [vmem:[#allocation3 + $0x70] sm:$0xff]
    %v137 = vld [vmem:[#allocation3 + $0x78] sm:$0xff]
    %v138 = vld [vmem:[%s4] sm:$0x1]
    %v140 = vperm.slane %v138, 0
    %142 = vmatpush.msra.mxu0 %v137
    %143 = vmatpush.msra.mxu0 %v136
    %144 = vmatpush.msra.mxu0 %v135
    %145 = vmatpush.msra.mxu0 %v134
    %146 = vmatpush.msra.mxu0 %v133
    %147 = vmatpush.msra.mxu0 %v132
    %148 = vmatpush.msra.mxu0 %v131
    %149 = vmatpush.msra.mxu0 %v130
    %150 = vmatpush.msra.mxu0 %v129
    %151 = vmatpush.msra.mxu0 %v128
    %152 = vmatpush.msra.mxu0 %v127
    %153 = vmatpush.msra.mxu0 %v126
    %154 = vmatpush.msra.mxu0 %v125
    %155 = vmatpush.msra.mxu0 %v124
    %156 = vmatpush.msra.mxu0 %v123
    %157 = vmatpush.msra.mxu0 %v122
    %158 = vmatmul.f32.gmra.mxu0 %v121
    %v159 = vpop.f32.mrf.mxu0
    %v160 = vadd.f32 %v140, %v159
    %161 = vdwg.mxu0
    %v162 = vmul.f32 %v160, 0.5
    %v163 = vmul.f32 %v160, 0.70710677
    %v164 = vmul.f32 %v163, %v163
    %v165 = vmin.f32 16.0, %v164
    %v166 = vmul.f32 %v165, 2.1237322e-06
    %v167 = vadd.f32 %v166, 0.00028619796
    %v168 = vmul.f32 %v165, %v167
    %v169 = vadd.f32 %v168, 0.0036580483
    %v170 = vmul.f32 %v165, %v169
    %v171 = vadd.f32 %v170, 0.05243302
    %v172 = vmul.f32 %v165, %v171
    %v173 = vadd.f32 %v172, 0.18741608
    %v174 = vmul.f32 %v165, %v173
    %v175 = vadd.f32 %v174, 1.1283791
    %v176 = vmul.f32 %v163, %v175
    %v177 = vmul.f32 %v165, 3.8918573e-05
    %v178 = vadd.f32 %v177, 0.001143296
    %v179 = vmul.f32 %v165, %v178
    %v180 = vadd.f32 %v179, 0.014752088
    %v181 = vmul.f32 %v165, %v180
    %v182 = vadd.f32 %v181, 0.112945676
    %v183 = vmul.f32 %v165, %v182
    %v184 = vadd.f32 %v183, 0.4994258
    %v185 = vmul.f32 %v165, %v184
    %v186 = vadd.f32 %v185, 1.0
    %v187 = vrcp.pop %v186
    %v188 = vmul.f32 %v186, %v187
    %v189 = vsub.f32 1.0, %v188
    %v190 = vmul.f32 %v187, %v189
    %v191 = vadd.f32 %v187, %v190
    %vm192 = vweird.f32 %v186
    %vm193 = vweird.f32 %v187
    %vm194 = vmor %vm192, %vm193
    %v195 = vsel %vm194, %v187, %v191
    %v196 = vand.u32 2147483647, %v186
    %vm197 = vcmp.eq.f32.partialorder %v196, 8.507059e+37
    %v198 = vand.u32 %v186, 2147483648
    %v199 = vor.u32 1.1754944e-38, %v198
    %v200 = vsel %vm197, %v199, %v195
    %v201 = vmul.f32 %v176, %v200
    %v202 = vmin.f32 %v201, 1.0
    %v203 = vmax.f32 %v202, -1.0
    %v204 = vadd.f32 %v203, 1.0
    %v205 = vmul.f32 %v162, %v204
    %v206 = vld [vmem:[%s5] sm:$0x1]
    %v208 = vperm.slane %v206, 0
    %v210 = vmul.f32 %v205, %v208
    %211 = vadd.xlane.f32.xlu0 %v210
    %v212 = vpop.xlane.xlu0 %211
    %v213 = vld [vmem:[#allocation2] sm:$0x1]
    %v215 = vperm.slane %v213, 0
    %v217 = vadd.f32 %v212, %v215
    %v218 = vxor.u32 %v217, 2147483648
    %v219 = vmul.f32 %v218, 1.442695
    %v220 = vpow.pop %v219
    %v221 = vadd.f32 %v220, 1.0
    %v222 = vrcp.pop %v221
    %v223 = vmul.f32 %v221, %v222
    %v224 = vsub.f32 1.0, %v223
    %v225 = vmul.f32 %v222, %v224
    %v226 = vadd.f32 %v222, %v225
    %vm227 = vweird.f32 %v221
    %vm228 = vweird.f32 %v222
    %vm229 = vmor %vm227, %vm228
    %v230 = vsel %vm229, %v222, %v226
    %v231 = vand.u32 2147483647, %v221
    %vm232 = vcmp.eq.f32.partialorder %v231, 8.507059e+37
    %v233 = vand.u32 %v221, 2147483648
    %v234 = vor.u32 1.1754944e-38, %v233
    %v235 = vsel %vm232, %v234, %v230
    %v236 = vmul.f32 1.0, %v235
    %vm237 = vcmask 7168
    %238 = vst.msk [vmem:[%s7] sm:$0xff] %vm237, %v236
    // Predicated region
    $region34: #{tpu_custom_call.1} parent=1 // pred_check
      _
    $region35: #{tpu_custom_call.1} parent=1 // pred_check_branch
      %240 = sbr.rel (0) target = $region37
    $region36: #{tpu_custom_call.1} parent=1 // pred_region
      _
    $region37: #{tpu_custom_call.1} parent=1 // pred_fallthru
      _
    // Predicated region
    $region38: #{tpu_custom_call.1} parent=1 // pred_check
      _
    $region39: #{tpu_custom_call.1} parent=1 // pred_check_branch
      %242 = sbr.rel (0) target = $region41
    $region40: #{tpu_custom_call.1} parent=1 // pred_region
      _
    $region41: #{tpu_custom_call.1} parent=1 // pred_fallthru
      _
    %243 = vsyncpa [#allocation4], 1

</llo_original>
